<compile_context>
chip_gen: v7x
topology: tpu7x:2x2x1
jax: 0.10.0
libtpu: 0.0.40
codegen_flags: <defaults>
</compile_context>

<pallas_src>
import jax
import jax.numpy as jnp
from jax.experimental import pallas as pl
from jax.experimental.pallas import tpu as pltpu

STEPS = 8      # global `steps`
VTH = 0.5      # LIFSpike threshold
TAU = 0.25     # LIFSpike leak


def spikenn_kernel(w1_ref, w2_ref, x_ref, o_ref):
    # x_ref: (T, 4, H2, L) f32 in VMEM, L = Nb*W2 (lane axis)
    # o_ref: (T, L) f32
    # w1_ref: (1,) SMEM, w2_ref: (4,) SMEM (K = kh*2 + kw)
    T, _, H2, L = x_ref.shape
    w1 = w1_ref[0]
    w2a, w2b, w2c, w2d = w2_ref[0], w2_ref[1], w2_ref[2], w2_ref[3]
    inv_steps = 1.0 / float(T)

    # Carried LIF state for both spiking layers (fresh state per forward call).
    u1 = jnp.zeros((4, H2, L), jnp.float32)
    o1 = jnp.zeros((4, H2, L), jnp.float32)
    u2 = jnp.zeros((H2, L), jnp.float32)
    o2 = jnp.zeros((H2, L), jnp.float32)

    rows = []
    for t in range(T):  # T == STEPS == 8, static unroll
        # conv1: 1x1 conv, 1->1 channel, no bias == scalar multiply.
        cur = x_ref[t] * w1                               # (4, H2, L)
        # spike(spike(.)) == spike(.) for binary inner output (tau=0.25, Vth=0.5).
        u1 = TAU * u1 * (1.0 - o1) + cur
        o1 = (u1 > VTH).astype(jnp.float32)
        # conv2: 2x2, stride 2, no bias == weighted sum over the K=4 window axis.
        z = w2a * o1[0] + w2b * o1[1] + w2c * o1[2] + w2d * o1[3]   # (H2, L)
        u2 = TAU * u2 * (1.0 - o2) + z
        o2 = (u2 > VTH).astype(jnp.float32)
        # out = sum over H' / steps, accumulated per time step (no (T,...) stacks).
        rows.append(jnp.sum(o2, axis=0, keepdims=True) * inv_steps)  # (1, L)

    o_ref[...] = jnp.concatenate(rows, axis=0)            # (T, L) lane-dense store


def _pick_block_batch(N, T, H2, W2, target_bytes=4 << 20):
    """Largest divisor of N whose per-step f32 input block stays <= target_bytes.

    Keeps double-buffered VMEM use well under the default scoped limit on all
    generations (incl. v7x's 64 MiB physical VMEM) while fattening the lane axis."""
    per_batch = T * 4 * H2 * W2 * 4
    nb = 1
    for cand in range(1, N + 1):
        if N % cand == 0 and cand * per_batch <= target_bytes:
            nb = cand
    return nb


def spikenn_forward(x, w1, w2, *, block_batch=None):
    """x: (N, 1, H, W, T) float32 (NCHW + time-last). Returns (N, 1, W//2, T)."""
    N, C, H, W, T = x.shape
    assert C == 1 and H % 2 == 0 and W % 2 == 0 and T == STEPS
    H2, W2 = H // 2, W // 2

    Nb = _pick_block_batch(N, T, H2, W2) if block_batch is None else block_batch
    assert N % Nb == 0
    G = N // Nb
    L = Nb * W2

    # Layout plumbing: (N,1,H,W,T) -> (G, T, K=4, H2, Nb*W2), K = kh*2 + kw,
    # lane axis = fused (batch-in-group, W2).
    xk = x[:, 0].reshape(G, Nb, H2, 2, W2, 2, T)          # (g, b, i, kh, j, kw, t)
    xk = jnp.transpose(xk, (0, 6, 3, 5, 2, 1, 4))         # (g, t, kh, kw, i, b, j)
    xk = xk.reshape(G, T, 4, H2, L).astype(jnp.float32)

    w1_s = w1.reshape(1).astype(jnp.float32)              # conv1 weight (1,1,1,1) -> (1,)
    w2_s = w2.reshape(4).astype(jnp.float32)              # conv2 weight (1,1,2,2) -> (4,)

    out = pl.pallas_call(
        spikenn_kernel,
        out_shape=jax.ShapeDtypeStruct((G, T, L), jnp.float32),
        grid=(G,),
        in_specs=[
            pl.BlockSpec(memory_space=pltpu.MemorySpace.SMEM),   # w1
            pl.BlockSpec(memory_space=pltpu.MemorySpace.SMEM),   # w2
            pl.BlockSpec((pl.Squeezed(), T, 4, H2, L),
                         lambda g: (g, 0, 0, 0, 0)),
        ],
        out_specs=pl.BlockSpec((pl.Squeezed(), T, L), lambda g: (g, 0, 0)),
        compiler_params=pltpu.CompilerParams(dimension_semantics=("parallel",)),
    )(w1_s, w2_s, xk)

    # Back to the PyTorch result layout: (N, C=1, W', T).
    out = out.reshape(G, T, Nb, W2)
    out = jnp.transpose(out, (0, 2, 3, 1)).reshape(N, W2, T)
    return out[:, None]


# ----------------------- pure-JAX reference (for verification) ------------------------
def _lif_ref(x):  # x: (..., T); full LIF, no simplification
    T = x.shape[-1]
    u = jnp.zeros(x.shape[:-1], jnp.float32)
    o_prev = jnp.zeros(x.shape[:-1], jnp.float32)
    outs = []
    for t in range(T):
        u = TAU * u * (1.0 - o_prev) + x[..., t]
        o = (u > VTH).astype(jnp.float32)
        outs.append(o)
        o_prev = o
    return jnp.stack(outs, axis=-1)


def spikenn_ref(x, w1, w2):
    # Faithful double-spike reference (verifies the spike(spike)==spike collapse).
    y = x * w1[0, 0, 0, 0]
    s = _lif_ref(_lif_ref(y))[:, 0]                       # (N, H, W, T)
    z = (w2[0, 0, 0, 0] * s[:, 0::2, 0::2] + w2[0, 0, 0, 1] * s[:, 0::2, 1::2]
         + w2[0, 0, 1, 0] * s[:, 1::2, 0::2] + w2[0, 0, 1, 1] * s[:, 1::2, 1::2])
    s2 = _lif_ref(_lif_ref(z[:, None]))                   # (N, 1, H2, W2, T)
    return jnp.sum(s2, axis=2) / STEPS                    # (N, 1, W2, T)


if __name__ == "__main__":
    key = jax.random.PRNGKey(0)
    N, C, H, W = 2, 1, 16, 16
    x = jax.random.uniform(key, (N, C, H, W, STEPS), dtype=jnp.float32)

    # Deterministic parameters exactly as in SpikeNN.__init__ (all-ones, frozen).
    w1 = jnp.ones((1, 1, 1, 1), jnp.float32)   # conv1: 1x1, stride 1, no bias
    w2 = jnp.ones((1, 1, 2, 2), jnp.float32)   # conv2: 2x2, stride 2, no bias

    out = jax.block_until_ready(spikenn_forward(x, w1, w2))
    assert out.shape == (N, 1, W // 2, STEPS), out.shape

    ref = jax.block_until_ready(spikenn_ref(x, w1, w2))
    assert jnp.allclose(out, ref, atol=1e-6), (out, ref)

    print("KERNEL_OK")
</pallas_src>

<mosaic_0001>
module attributes {stable_mosaic.version = 11 : i64} {
  func.func @spikenn_kernel(%arg0: i32, %arg1: memref<1xf32, #tpu.memory_space<smem>>, %arg2: memref<4xf32, #tpu.memory_space<smem>>, %arg3: memref<1x8x4x8x16xf32, #tpu.memory_space<vmem>>, %arg4: memref<1x8x16xf32, #tpu.memory_space<vmem>>) attributes {dimension_semantics = [#tpu.dimension_semantics<parallel>], iteration_bounds = array<i64: 1>, scalar_prefetch = 0 : i64, scratch_operands = 0 : i64, tpu.core_type = #tpu.core_type<tc>, window_params = [{transform_indices = @transform_0, window_bounds = array<i64: 1>}, {transform_indices = @transform_1, window_bounds = array<i64: 4>}, {transform_indices = @transform_2, window_bounds = array<i64: 1, 8, 4, 8, 16>}, {transform_indices = @transform_3, window_bounds = array<i64: 1, 8, 16>}]} {
    %c0 = arith.constant 0 : index
    %0 = memref.load %arg1[%c0] : memref<1xf32, #tpu.memory_space<smem>>
    %c0_0 = arith.constant 0 : index
    %1 = memref.load %arg2[%c0_0] : memref<4xf32, #tpu.memory_space<smem>>
    %c1 = arith.constant 1 : index
    %2 = memref.load %arg2[%c1] : memref<4xf32, #tpu.memory_space<smem>>
    %c2 = arith.constant 2 : index
    %3 = memref.load %arg2[%c2] : memref<4xf32, #tpu.memory_space<smem>>
    %c3 = arith.constant 3 : index
    %4 = memref.load %arg2[%c3] : memref<4xf32, #tpu.memory_space<smem>>
    %cst = arith.constant 0.000000e+00 : f32
    %5 = vector.broadcast %cst : f32 to vector<4x8x16xf32>
    %cst_1 = arith.constant 0.000000e+00 : f32
    %6 = vector.broadcast %cst_1 : f32 to vector<4x8x16xf32>
    %cst_2 = arith.constant 0.000000e+00 : f32
    %7 = vector.broadcast %cst_2 : f32 to vector<8x16xf32>
    %cst_3 = arith.constant 0.000000e+00 : f32
    %8 = vector.broadcast %cst_3 : f32 to vector<8x16xf32>
    %c0_4 = arith.constant 0 : index
    %c0_5 = arith.constant 0 : index
    %c0_6 = arith.constant 0 : index
    %c0_7 = arith.constant 0 : index
    %c0_8 = arith.constant 0 : index
    %9 = vector.load %arg3[%c0_4, %c0_5, %c0_6, %c0_7, %c0_8] : memref<1x8x4x8x16xf32, #tpu.memory_space<vmem>>, vector<1x1x4x8x16xf32>
    %10 = vector.shape_cast %9 : vector<1x1x4x8x16xf32> to vector<4x8x16xf32>
    %11 = vector.broadcast %0 : f32 to vector<4x8x16xf32>
    %12 = arith.mulf %10, %11 : vector<4x8x16xf32>
    %cst_9 = arith.constant 2.500000e-01 : f32
    %13 = vector.broadcast %cst_9 : f32 to vector<4x8x16xf32>
    %14 = arith.mulf %13, %5 : vector<4x8x16xf32>
    %cst_10 = arith.constant 1.000000e+00 : f32
    %15 = vector.broadcast %cst_10 : f32 to vector<4x8x16xf32>
    %16 = arith.subf %15, %6 : vector<4x8x16xf32>
    %17 = arith.mulf %14, %16 : vector<4x8x16xf32>
    %18 = arith.addf %17, %12 : vector<4x8x16xf32>
    %cst_11 = arith.constant 5.000000e-01 : f32
    %19 = vector.broadcast %cst_11 : f32 to vector<4x8x16xf32>
    %20 = arith.cmpf ogt, %18, %19 : vector<4x8x16xf32>
    %21 = arith.extui %20 : vector<4x8x16xi1> to vector<4x8x16xi32>
    %22 = arith.sitofp %21 : vector<4x8x16xi32> to vector<4x8x16xf32>
    %23 = vector.extract_strided_slice %22 {offsets = [0, 0, 0], sizes = [1, 8, 16], strides = [1, 1, 1]} : vector<4x8x16xf32> to vector<1x8x16xf32>
    %24 = vector.shape_cast %23 : vector<1x8x16xf32> to vector<8x16xf32>
    %25 = vector.broadcast %1 : f32 to vector<8x16xf32>
    %26 = arith.mulf %25, %24 : vector<8x16xf32>
    %27 = vector.extract_strided_slice %22 {offsets = [1, 0, 0], sizes = [1, 8, 16], strides = [1, 1, 1]} : vector<4x8x16xf32> to vector<1x8x16xf32>
    %28 = vector.shape_cast %27 : vector<1x8x16xf32> to vector<8x16xf32>
    %29 = vector.broadcast %2 : f32 to vector<8x16xf32>
    %30 = arith.mulf %29, %28 : vector<8x16xf32>
    %31 = arith.addf %26, %30 : vector<8x16xf32>
    %32 = vector.extract_strided_slice %22 {offsets = [2, 0, 0], sizes = [1, 8, 16], strides = [1, 1, 1]} : vector<4x8x16xf32> to vector<1x8x16xf32>
    %33 = vector.shape_cast %32 : vector<1x8x16xf32> to vector<8x16xf32>
    %34 = vector.broadcast %3 : f32 to vector<8x16xf32>
    %35 = arith.mulf %34, %33 : vector<8x16xf32>
    %36 = arith.addf %31, %35 : vector<8x16xf32>
    %37 = vector.extract_strided_slice %22 {offsets = [3, 0, 0], sizes = [1, 8, 16], strides = [1, 1, 1]} : vector<4x8x16xf32> to vector<1x8x16xf32>
    %38 = vector.shape_cast %37 : vector<1x8x16xf32> to vector<8x16xf32>
    %39 = vector.broadcast %4 : f32 to vector<8x16xf32>
    %40 = arith.mulf %39, %38 : vector<8x16xf32>
    %41 = arith.addf %36, %40 : vector<8x16xf32>
    %cst_12 = arith.constant 2.500000e-01 : f32
    %42 = vector.broadcast %cst_12 : f32 to vector<8x16xf32>
    %43 = arith.mulf %42, %7 : vector<8x16xf32>
    %cst_13 = arith.constant 1.000000e+00 : f32
    %44 = vector.broadcast %cst_13 : f32 to vector<8x16xf32>
    %45 = arith.subf %44, %8 : vector<8x16xf32>
    %46 = arith.mulf %43, %45 : vector<8x16xf32>
    %47 = arith.addf %46, %41 : vector<8x16xf32>
    %cst_14 = arith.constant 5.000000e-01 : f32
    %48 = vector.broadcast %cst_14 : f32 to vector<8x16xf32>
    %49 = arith.cmpf ogt, %47, %48 : vector<8x16xf32>
    %50 = arith.extui %49 : vector<8x16xi1> to vector<8x16xi32>
    %51 = arith.sitofp %50 : vector<8x16xi32> to vector<8x16xf32>
    %cst_15 = arith.constant dense<0.000000e+00> : vector<16xf32>
    %52 = vector.multi_reduction <add>, %51, %cst_15 [0] : vector<8x16xf32> to vector<16xf32>
    %53 = vector.shape_cast %52 : vector<16xf32> to vector<1x16xf32>
    %cst_16 = arith.constant 1.250000e-01 : f32
    %54 = vector.broadcast %cst_16 : f32 to vector<1x16xf32>
    %55 = arith.mulf %53, %54 : vector<1x16xf32>
    %c0_17 = arith.constant 0 : index
    %c1_18 = arith.constant 1 : index
    %c0_19 = arith.constant 0 : index
    %c0_20 = arith.constant 0 : index
    %c0_21 = arith.constant 0 : index
    %56 = vector.load %arg3[%c0_17, %c1_18, %c0_19, %c0_20, %c0_21] : memref<1x8x4x8x16xf32, #tpu.memory_space<vmem>>, vector<1x1x4x8x16xf32>
    %57 = vector.shape_cast %56 : vector<1x1x4x8x16xf32> to vector<4x8x16xf32>
    %58 = vector.broadcast %0 : f32 to vector<4x8x16xf32>
    %59 = arith.mulf %57, %58 : vector<4x8x16xf32>
    %cst_22 = arith.constant 2.500000e-01 : f32
    %60 = vector.broadcast %cst_22 : f32 to vector<4x8x16xf32>
    %61 = arith.mulf %60, %18 : vector<4x8x16xf32>
    %cst_23 = arith.constant 1.000000e+00 : f32
    %62 = vector.broadcast %cst_23 : f32 to vector<4x8x16xf32>
    %63 = arith.subf %62, %22 : vector<4x8x16xf32>
    %64 = arith.mulf %61, %63 : vector<4x8x16xf32>
    %65 = arith.addf %64, %59 : vector<4x8x16xf32>
    %cst_24 = arith.constant 5.000000e-01 : f32
    %66 = vector.broadcast %cst_24 : f32 to vector<4x8x16xf32>
    %67 = arith.cmpf ogt, %65, %66 : vector<4x8x16xf32>
    %68 = arith.extui %67 : vector<4x8x16xi1> to vector<4x8x16xi32>
    %69 = arith.sitofp %68 : vector<4x8x16xi32> to vector<4x8x16xf32>
    %70 = vector.extract_strided_slice %69 {offsets = [0, 0, 0], sizes = [1, 8, 16], strides = [1, 1, 1]} : vector<4x8x16xf32> to vector<1x8x16xf32>
    %71 = vector.shape_cast %70 : vector<1x8x16xf32> to vector<8x16xf32>
    %72 = vector.broadcast %1 : f32 to vector<8x16xf32>
    %73 = arith.mulf %72, %71 : vector<8x16xf32>
    %74 = vector.extract_strided_slice %69 {offsets = [1, 0, 0], sizes = [1, 8, 16], strides = [1, 1, 1]} : vector<4x8x16xf32> to vector<1x8x16xf32>
    %75 = vector.shape_cast %74 : vector<1x8x16xf32> to vector<8x16xf32>
    %76 = vector.broadcast %2 : f32 to vector<8x16xf32>
    %77 = arith.mulf %76, %75 : vector<8x16xf32>
    %78 = arith.addf %73, %77 : vector<8x16xf32>
    %79 = vector.extract_strided_slice %69 {offsets = [2, 0, 0], sizes = [1, 8, 16], strides = [1, 1, 1]} : vector<4x8x16xf32> to vector<1x8x16xf32>
    %80 = vector.shape_cast %79 : vector<1x8x16xf32> to vector<8x16xf32>
    %81 = vector.broadcast %3 : f32 to vector<8x16xf32>
    %82 = arith.mulf %81, %80 : vector<8x16xf32>
    %83 = arith.addf %78, %82 : vector<8x16xf32>
    %84 = vector.extract_strided_slice %69 {offsets = [3, 0, 0], sizes = [1, 8, 16], strides = [1, 1, 1]} : vector<4x8x16xf32> to vector<1x8x16xf32>
    %85 = vector.shape_cast %84 : vector<1x8x16xf32> to vector<8x16xf32>
    %86 = vector.broadcast %4 : f32 to vector<8x16xf32>
    %87 = arith.mulf %86, %85 : vector<8x16xf32>
    %88 = arith.addf %83, %87 : vector<8x16xf32>
    %cst_25 = arith.constant 2.500000e-01 : f32
    %89 = vector.broadcast %cst_25 : f32 to vector<8x16xf32>
    %90 = arith.mulf %89, %47 : vector<8x16xf32>
    %cst_26 = arith.constant 1.000000e+00 : f32
    %91 = vector.broadcast %cst_26 : f32 to vector<8x16xf32>
    %92 = arith.subf %91, %51 : vector<8x16xf32>
    %93 = arith.mulf %90, %92 : vector<8x16xf32>
    %94 = arith.addf %93, %88 : vector<8x16xf32>
    %cst_27 = arith.constant 5.000000e-01 : f32
    %95 = vector.broadcast %cst_27 : f32 to vector<8x16xf32>
    %96 = arith.cmpf ogt, %94, %95 : vector<8x16xf32>
    %97 = arith.extui %96 : vector<8x16xi1> to vector<8x16xi32>
    %98 = arith.sitofp %97 : vector<8x16xi32> to vector<8x16xf32>
    %cst_28 = arith.constant dense<0.000000e+00> : vector<16xf32>
    %99 = vector.multi_reduction <add>, %98, %cst_28 [0] : vector<8x16xf32> to vector<16xf32>
    %100 = vector.shape_cast %99 : vector<16xf32> to vector<1x16xf32>
    %cst_29 = arith.constant 1.250000e-01 : f32
    %101 = vector.broadcast %cst_29 : f32 to vector<1x16xf32>
    %102 = arith.mulf %100, %101 : vector<1x16xf32>
    %c0_30 = arith.constant 0 : index
    %c2_31 = arith.constant 2 : index
    %c0_32 = arith.constant 0 : index
    %c0_33 = arith.constant 0 : index
    %c0_34 = arith.constant 0 : index
    %103 = vector.load %arg3[%c0_30, %c2_31, %c0_32, %c0_33, %c0_34] : memref<1x8x4x8x16xf32, #tpu.memory_space<vmem>>, vector<1x1x4x8x16xf32>
    %104 = vector.shape_cast %103 : vector<1x1x4x8x16xf32> to vector<4x8x16xf32>
    %105 = vector.broadcast %0 : f32 to vector<4x8x16xf32>
    %106 = arith.mulf %104, %105 : vector<4x8x16xf32>
    %cst_35 = arith.constant 2.500000e-01 : f32
    %107 = vector.broadcast %cst_35 : f32 to vector<4x8x16xf32>
    %108 = arith.mulf %107, %65 : vector<4x8x16xf32>
    %cst_36 = arith.constant 1.000000e+00 : f32
    %109 = vector.broadcast %cst_36 : f32 to vector<4x8x16xf32>
    %110 = arith.subf %109, %69 : vector<4x8x16xf32>
    %111 = arith.mulf %108, %110 : vector<4x8x16xf32>
    %112 = arith.addf %111, %106 : vector<4x8x16xf32>
    %cst_37 = arith.constant 5.000000e-01 : f32
    %113 = vector.broadcast %cst_37 : f32 to vector<4x8x16xf32>
    %114 = arith.cmpf ogt, %112, %113 : vector<4x8x16xf32>
    %115 = arith.extui %114 : vector<4x8x16xi1> to vector<4x8x16xi32>
    %116 = arith.sitofp %115 : vector<4x8x16xi32> to vector<4x8x16xf32>
    %117 = vector.extract_strided_slice %116 {offsets = [0, 0, 0], sizes = [1, 8, 16], strides = [1, 1, 1]} : vector<4x8x16xf32> to vector<1x8x16xf32>
    %118 = vector.shape_cast %117 : vector<1x8x16xf32> to vector<8x16xf32>
    %119 = vector.broadcast %1 : f32 to vector<8x16xf32>
    %120 = arith.mulf %119, %118 : vector<8x16xf32>
    %121 = vector.extract_strided_slice %116 {offsets = [1, 0, 0], sizes = [1, 8, 16], strides = [1, 1, 1]} : vector<4x8x16xf32> to vector<1x8x16xf32>
    %122 = vector.shape_cast %121 : vector<1x8x16xf32> to vector<8x16xf32>
    %123 = vector.broadcast %2 : f32 to vector<8x16xf32>
    %124 = arith.mulf %123, %122 : vector<8x16xf32>
    %125 = arith.addf %120, %124 : vector<8x16xf32>
    %126 = vector.extract_strided_slice %116 {offsets = [2, 0, 0], sizes = [1, 8, 16], strides = [1, 1, 1]} : vector<4x8x16xf32> to vector<1x8x16xf32>
    %127 = vector.shape_cast %126 : vector<1x8x16xf32> to vector<8x16xf32>
    %128 = vector.broadcast %3 : f32 to vector<8x16xf32>
    %129 = arith.mulf %128, %127 : vector<8x16xf32>
    %130 = arith.addf %125, %129 : vector<8x16xf32>
    %131 = vector.extract_strided_slice %116 {offsets = [3, 0, 0], sizes = [1, 8, 16], strides = [1, 1, 1]} : vector<4x8x16xf32> to vector<1x8x16xf32>
    %132 = vector.shape_cast %131 : vector<1x8x16xf32> to vector<8x16xf32>
    %133 = vector.broadcast %4 : f32 to vector<8x16xf32>
    %134 = arith.mulf %133, %132 : vector<8x16xf32>
    %135 = arith.addf %130, %134 : vector<8x16xf32>
    %cst_38 = arith.constant 2.500000e-01 : f32
    %136 = vector.broadcast %cst_38 : f32 to vector<8x16xf32>
    %137 = arith.mulf %136, %94 : vector<8x16xf32>
    %cst_39 = arith.constant 1.000000e+00 : f32
    %138 = vector.broadcast %cst_39 : f32 to vector<8x16xf32>
    %139 = arith.subf %138, %98 : vector<8x16xf32>
    %140 = arith.mulf %137, %139 : vector<8x16xf32>
    %141 = arith.addf %140, %135 : vector<8x16xf32>
    %cst_40 = arith.constant 5.000000e-01 : f32
    %142 = vector.broadcast %cst_40 : f32 to vector<8x16xf32>
    %143 = arith.cmpf ogt, %141, %142 : vector<8x16xf32>
    %144 = arith.extui %143 : vector<8x16xi1> to vector<8x16xi32>
    %145 = arith.sitofp %144 : vector<8x16xi32> to vector<8x16xf32>
    %cst_41 = arith.constant dense<0.000000e+00> : vector<16xf32>
    %146 = vector.multi_reduction <add>, %145, %cst_41 [0] : vector<8x16xf32> to vector<16xf32>
    %147 = vector.shape_cast %146 : vector<16xf32> to vector<1x16xf32>
    %cst_42 = arith.constant 1.250000e-01 : f32
    %148 = vector.broadcast %cst_42 : f32 to vector<1x16xf32>
    %149 = arith.mulf %147, %148 : vector<1x16xf32>
    %c0_43 = arith.constant 0 : index
    %c3_44 = arith.constant 3 : index
    %c0_45 = arith.constant 0 : index
    %c0_46 = arith.constant 0 : index
    %c0_47 = arith.constant 0 : index
    %150 = vector.load %arg3[%c0_43, %c3_44, %c0_45, %c0_46, %c0_47] : memref<1x8x4x8x16xf32, #tpu.memory_space<vmem>>, vector<1x1x4x8x16xf32>
    %151 = vector.shape_cast %150 : vector<1x1x4x8x16xf32> to vector<4x8x16xf32>
    %152 = vector.broadcast %0 : f32 to vector<4x8x16xf32>
    %153 = arith.mulf %151, %152 : vector<4x8x16xf32>
    %cst_48 = arith.constant 2.500000e-01 : f32
    %154 = vector.broadcast %cst_48 : f32 to vector<4x8x16xf32>
    %155 = arith.mulf %154, %112 : vector<4x8x16xf32>
    %cst_49 = arith.constant 1.000000e+00 : f32
    %156 = vector.broadcast %cst_49 : f32 to vector<4x8x16xf32>
    %157 = arith.subf %156, %116 : vector<4x8x16xf32>
    %158 = arith.mulf %155, %157 : vector<4x8x16xf32>
    %159 = arith.addf %158, %153 : vector<4x8x16xf32>
    %cst_50 = arith.constant 5.000000e-01 : f32
    %160 = vector.broadcast %cst_50 : f32 to vector<4x8x16xf32>
    %161 = arith.cmpf ogt, %159, %160 : vector<4x8x16xf32>
    %162 = arith.extui %161 : vector<4x8x16xi1> to vector<4x8x16xi32>
    %163 = arith.sitofp %162 : vector<4x8x16xi32> to vector<4x8x16xf32>
    %164 = vector.extract_strided_slice %163 {offsets = [0, 0, 0], sizes = [1, 8, 16], strides = [1, 1, 1]} : vector<4x8x16xf32> to vector<1x8x16xf32>
    %165 = vector.shape_cast %164 : vector<1x8x16xf32> to vector<8x16xf32>
    %166 = vector.broadcast %1 : f32 to vector<8x16xf32>
    %167 = arith.mulf %166, %165 : vector<8x16xf32>
    %168 = vector.extract_strided_slice %163 {offsets = [1, 0, 0], sizes = [1, 8, 16], strides = [1, 1, 1]} : vector<4x8x16xf32> to vector<1x8x16xf32>
    %169 = vector.shape_cast %168 : vector<1x8x16xf32> to vector<8x16xf32>
    %170 = vector.broadcast %2 : f32 to vector<8x16xf32>
    %171 = arith.mulf %170, %169 : vector<8x16xf32>
    %172 = arith.addf %167, %171 : vector<8x16xf32>
    %173 = vector.extract_strided_slice %163 {offsets = [2, 0, 0], sizes = [1, 8, 16], strides = [1, 1, 1]} : vector<4x8x16xf32> to vector<1x8x16xf32>
    %174 = vector.shape_cast %173 : vector<1x8x16xf32> to vector<8x16xf32>
    %175 = vector.broadcast %3 : f32 to vector<8x16xf32>
    %176 = arith.mulf %175, %174 : vector<8x16xf32>
    %177 = arith.addf %172, %176 : vector<8x16xf32>
    %178 = vector.extract_strided_slice %163 {offsets = [3, 0, 0], sizes = [1, 8, 16], strides = [1, 1, 1]} : vector<4x8x16xf32> to vector<1x8x16xf32>
    %179 = vector.shape_cast %178 : vector<1x8x16xf32> to vector<8x16xf32>
    %180 = vector.broadcast %4 : f32 to vector<8x16xf32>
    %181 = arith.mulf %180, %179 : vector<8x16xf32>
    %182 = arith.addf %177, %181 : vector<8x16xf32>
    %cst_51 = arith.constant 2.500000e-01 : f32
    %183 = vector.broadcast %cst_51 : f32 to vector<8x16xf32>
    %184 = arith.mulf %183, %141 : vector<8x16xf32>
    %cst_52 = arith.constant 1.000000e+00 : f32
    %185 = vector.broadcast %cst_52 : f32 to vector<8x16xf32>
    %186 = arith.subf %185, %145 : vector<8x16xf32>
    %187 = arith.mulf %184, %186 : vector<8x16xf32>
    %188 = arith.addf %187, %182 : vector<8x16xf32>
    %cst_53 = arith.constant 5.000000e-01 : f32
    %189 = vector.broadcast %cst_53 : f32 to vector<8x16xf32>
    %190 = arith.cmpf ogt, %188, %189 : vector<8x16xf32>
    %191 = arith.extui %190 : vector<8x16xi1> to vector<8x16xi32>
    %192 = arith.sitofp %191 : vector<8x16xi32> to vector<8x16xf32>
    %cst_54 = arith.constant dense<0.000000e+00> : vector<16xf32>
    %193 = vector.multi_reduction <add>, %192, %cst_54 [0] : vector<8x16xf32> to vector<16xf32>
    %194 = vector.shape_cast %193 : vector<16xf32> to vector<1x16xf32>
    %cst_55 = arith.constant 1.250000e-01 : f32
    %195 = vector.broadcast %cst_55 : f32 to vector<1x16xf32>
    %196 = arith.mulf %194, %195 : vector<1x16xf32>
    %c0_56 = arith.constant 0 : index
    %c4 = arith.constant 4 : index
    %c0_57 = arith.constant 0 : index
    %c0_58 = arith.constant 0 : index
    %c0_59 = arith.constant 0 : index
    %197 = vector.load %arg3[%c0_56, %c4, %c0_57, %c0_58, %c0_59] : memref<1x8x4x8x16xf32, #tpu.memory_space<vmem>>, vector<1x1x4x8x16xf32>
    %198 = vector.shape_cast %197 : vector<1x1x4x8x16xf32> to vector<4x8x16xf32>
    %199 = vector.broadcast %0 : f32 to vector<4x8x16xf32>
    %200 = arith.mulf %198, %199 : vector<4x8x16xf32>
    %cst_60 = arith.constant 2.500000e-01 : f32
    %201 = vector.broadcast %cst_60 : f32 to vector<4x8x16xf32>
    %202 = arith.mulf %201, %159 : vector<4x8x16xf32>
    %cst_61 = arith.constant 1.000000e+00 : f32
    %203 = vector.broadcast %cst_61 : f32 to vector<4x8x16xf32>
    %204 = arith.subf %203, %163 : vector<4x8x16xf32>
    %205 = arith.mulf %202, %204 : vector<4x8x16xf32>
    %206 = arith.addf %205, %200 : vector<4x8x16xf32>
    %cst_62 = arith.constant 5.000000e-01 : f32
    %207 = vector.broadcast %cst_62 : f32 to vector<4x8x16xf32>
    %208 = arith.cmpf ogt, %206, %207 : vector<4x8x16xf32>
    %209 = arith.extui %208 : vector<4x8x16xi1> to vector<4x8x16xi32>
    %210 = arith.sitofp %209 : vector<4x8x16xi32> to vector<4x8x16xf32>
    %211 = vector.extract_strided_slice %210 {offsets = [0, 0, 0], sizes = [1, 8, 16], strides = [1, 1, 1]} : vector<4x8x16xf32> to vector<1x8x16xf32>
    %212 = vector.shape_cast %211 : vector<1x8x16xf32> to vector<8x16xf32>
    %213 = vector.broadcast %1 : f32 to vector<8x16xf32>
    %214 = arith.mulf %213, %212 : vector<8x16xf32>
    %215 = vector.extract_strided_slice %210 {offsets = [1, 0, 0], sizes = [1, 8, 16], strides = [1, 1, 1]} : vector<4x8x16xf32> to vector<1x8x16xf32>
    %216 = vector.shape_cast %215 : vector<1x8x16xf32> to vector<8x16xf32>
    %217 = vector.broadcast %2 : f32 to vector<8x16xf32>
    %218 = arith.mulf %217, %216 : vector<8x16xf32>
    %219 = arith.addf %214, %218 : vector<8x16xf32>
    %220 = vector.extract_strided_slice %210 {offsets = [2, 0, 0], sizes = [1, 8, 16], strides = [1, 1, 1]} : vector<4x8x16xf32> to vector<1x8x16xf32>
    %221 = vector.shape_cast %220 : vector<1x8x16xf32> to vector<8x16xf32>
    %222 = vector.broadcast %3 : f32 to vector<8x16xf32>
    %223 = arith.mulf %222, %221 : vector<8x16xf32>
    %224 = arith.addf %219, %223 : vector<8x16xf32>
    %225 = vector.extract_strided_slice %210 {offsets = [3, 0, 0], sizes = [1, 8, 16], strides = [1, 1, 1]} : vector<4x8x16xf32> to vector<1x8x16xf32>
    %226 = vector.shape_cast %225 : vector<1x8x16xf32> to vector<8x16xf32>
    %227 = vector.broadcast %4 : f32 to vector<8x16xf32>
    %228 = arith.mulf %227, %226 : vector<8x16xf32>
    %229 = arith.addf %224, %228 : vector<8x16xf32>
    %cst_63 = arith.constant 2.500000e-01 : f32
    %230 = vector.broadcast %cst_63 : f32 to vector<8x16xf32>
    %231 = arith.mulf %230, %188 : vector<8x16xf32>
    %cst_64 = arith.constant 1.000000e+00 : f32
    %232 = vector.broadcast %cst_64 : f32 to vector<8x16xf32>
    %233 = arith.subf %232, %192 : vector<8x16xf32>
    %234 = arith.mulf %231, %233 : vector<8x16xf32>
    %235 = arith.addf %234, %229 : vector<8x16xf32>
    %cst_65 = arith.constant 5.000000e-01 : f32
    %236 = vector.broadcast %cst_65 : f32 to vector<8x16xf32>
    %237 = arith.cmpf ogt, %235, %236 : vector<8x16xf32>
    %238 = arith.extui %237 : vector<8x16xi1> to vector<8x16xi32>
    %239 = arith.sitofp %238 : vector<8x16xi32> to vector<8x16xf32>
    %cst_66 = arith.constant dense<0.000000e+00> : vector<16xf32>
    %240 = vector.multi_reduction <add>, %239, %cst_66 [0] : vector<8x16xf32> to vector<16xf32>
    %241 = vector.shape_cast %240 : vector<16xf32> to vector<1x16xf32>
    %cst_67 = arith.constant 1.250000e-01 : f32
    %242 = vector.broadcast %cst_67 : f32 to vector<1x16xf32>
    %243 = arith.mulf %241, %242 : vector<1x16xf32>
    %c0_68 = arith.constant 0 : index
    %c5 = arith.constant 5 : index
    %c0_69 = arith.constant 0 : index
    %c0_70 = arith.constant 0 : index
    %c0_71 = arith.constant 0 : index
    %244 = vector.load %arg3[%c0_68, %c5, %c0_69, %c0_70, %c0_71] : memref<1x8x4x8x16xf32, #tpu.memory_space<vmem>>, vector<1x1x4x8x16xf32>
    %245 = vector.shape_cast %244 : vector<1x1x4x8x16xf32> to vector<4x8x16xf32>
    %246 = vector.broadcast %0 : f32 to vector<4x8x16xf32>
    %247 = arith.mulf %245, %246 : vector<4x8x16xf32>
    %cst_72 = arith.constant 2.500000e-01 : f32
    %248 = vector.broadcast %cst_72 : f32 to vector<4x8x16xf32>
    %249 = arith.mulf %248, %206 : vector<4x8x16xf32>
    %cst_73 = arith.constant 1.000000e+00 : f32
    %250 = vector.broadcast %cst_73 : f32 to vector<4x8x16xf32>
    %251 = arith.subf %250, %210 : vector<4x8x16xf32>
    %252 = arith.mulf %249, %251 : vector<4x8x16xf32>
    %253 = arith.addf %252, %247 : vector<4x8x16xf32>
    %cst_74 = arith.constant 5.000000e-01 : f32
    %254 = vector.broadcast %cst_74 : f32 to vector<4x8x16xf32>
    %255 = arith.cmpf ogt, %253, %254 : vector<4x8x16xf32>
    %256 = arith.extui %255 : vector<4x8x16xi1> to vector<4x8x16xi32>
    %257 = arith.sitofp %256 : vector<4x8x16xi32> to vector<4x8x16xf32>
    %258 = vector.extract_strided_slice %257 {offsets = [0, 0, 0], sizes = [1, 8, 16], strides = [1, 1, 1]} : vector<4x8x16xf32> to vector<1x8x16xf32>
    %259 = vector.shape_cast %258 : vector<1x8x16xf32> to vector<8x16xf32>
    %260 = vector.broadcast %1 : f32 to vector<8x16xf32>
    %261 = arith.mulf %260, %259 : vector<8x16xf32>
    %262 = vector.extract_strided_slice %257 {offsets = [1, 0, 0], sizes = [1, 8, 16], strides = [1, 1, 1]} : vector<4x8x16xf32> to vector<1x8x16xf32>
    %263 = vector.shape_cast %262 : vector<1x8x16xf32> to vector<8x16xf32>
    %264 = vector.broadcast %2 : f32 to vector<8x16xf32>
    %265 = arith.mulf %264, %263 : vector<8x16xf32>
    %266 = arith.addf %261, %265 : vector<8x16xf32>
    %267 = vector.extract_strided_slice %257 {offsets = [2, 0, 0], sizes = [1, 8, 16], strides = [1, 1, 1]} : vector<4x8x16xf32> to vector<1x8x16xf32>
    %268 = vector.shape_cast %267 : vector<1x8x16xf32> to vector<8x16xf32>
    %269 = vector.broadcast %3 : f32 to vector<8x16xf32>
    %270 = arith.mulf %269, %268 : vector<8x16xf32>
    %271 = arith.addf %266, %270 : vector<8x16xf32>
    %272 = vector.extract_strided_slice %257 {offsets = [3, 0, 0], sizes = [1, 8, 16], strides = [1, 1, 1]} : vector<4x8x16xf32> to vector<1x8x16xf32>
    %273 = vector.shape_cast %272 : vector<1x8x16xf32> to vector<8x16xf32>
    %274 = vector.broadcast %4 : f32 to vector<8x16xf32>
    %275 = arith.mulf %274, %273 : vector<8x16xf32>
    %276 = arith.addf %271, %275 : vector<8x16xf32>
    %cst_75 = arith.constant 2.500000e-01 : f32
    %277 = vector.broadcast %cst_75 : f32 to vector<8x16xf32>
    %278 = arith.mulf %277, %235 : vector<8x16xf32>
    %cst_76 = arith.constant 1.000000e+00 : f32
    %279 = vector.broadcast %cst_76 : f32 to vector<8x16xf32>
    %280 = arith.subf %279, %239 : vector<8x16xf32>
    %281 = arith.mulf %278, %280 : vector<8x16xf32>
    %282 = arith.addf %281, %276 : vector<8x16xf32>
    %cst_77 = arith.constant 5.000000e-01 : f32
    %283 = vector.broadcast %cst_77 : f32 to vector<8x16xf32>
    %284 = arith.cmpf ogt, %282, %283 : vector<8x16xf32>
    %285 = arith.extui %284 : vector<8x16xi1> to vector<8x16xi32>
    %286 = arith.sitofp %285 : vector<8x16xi32> to vector<8x16xf32>
    %cst_78 = arith.constant dense<0.000000e+00> : vector<16xf32>
    %287 = vector.multi_reduction <add>, %286, %cst_78 [0] : vector<8x16xf32> to vector<16xf32>
    %288 = vector.shape_cast %287 : vector<16xf32> to vector<1x16xf32>
    %cst_79 = arith.constant 1.250000e-01 : f32
    %289 = vector.broadcast %cst_79 : f32 to vector<1x16xf32>
    %290 = arith.mulf %288, %289 : vector<1x16xf32>
    %c0_80 = arith.constant 0 : index
    %c6 = arith.constant 6 : index
    %c0_81 = arith.constant 0 : index
    %c0_82 = arith.constant 0 : index
    %c0_83 = arith.constant 0 : index
    %291 = vector.load %arg3[%c0_80, %c6, %c0_81, %c0_82, %c0_83] : memref<1x8x4x8x16xf32, #tpu.memory_space<vmem>>, vector<1x1x4x8x16xf32>
    %292 = vector.shape_cast %291 : vector<1x1x4x8x16xf32> to vector<4x8x16xf32>
    %293 = vector.broadcast %0 : f32 to vector<4x8x16xf32>
    %294 = arith.mulf %292, %293 : vector<4x8x16xf32>
    %cst_84 = arith.constant 2.500000e-01 : f32
    %295 = vector.broadcast %cst_84 : f32 to vector<4x8x16xf32>
    %296 = arith.mulf %295, %253 : vector<4x8x16xf32>
    %cst_85 = arith.constant 1.000000e+00 : f32
    %297 = vector.broadcast %cst_85 : f32 to vector<4x8x16xf32>
    %298 = arith.subf %297, %257 : vector<4x8x16xf32>
    %299 = arith.mulf %296, %298 : vector<4x8x16xf32>
    %300 = arith.addf %299, %294 : vector<4x8x16xf32>
    %cst_86 = arith.constant 5.000000e-01 : f32
    %301 = vector.broadcast %cst_86 : f32 to vector<4x8x16xf32>
    %302 = arith.cmpf ogt, %300, %301 : vector<4x8x16xf32>
    %303 = arith.extui %302 : vector<4x8x16xi1> to vector<4x8x16xi32>
    %304 = arith.sitofp %303 : vector<4x8x16xi32> to vector<4x8x16xf32>
    %305 = vector.extract_strided_slice %304 {offsets = [0, 0, 0], sizes = [1, 8, 16], strides = [1, 1, 1]} : vector<4x8x16xf32> to vector<1x8x16xf32>
    %306 = vector.shape_cast %305 : vector<1x8x16xf32> to vector<8x16xf32>
    %307 = vector.broadcast %1 : f32 to vector<8x16xf32>
    %308 = arith.mulf %307, %306 : vector<8x16xf32>
    %309 = vector.extract_strided_slice %304 {offsets = [1, 0, 0], sizes = [1, 8, 16], strides = [1, 1, 1]} : vector<4x8x16xf32> to vector<1x8x16xf32>
    %310 = vector.shape_cast %309 : vector<1x8x16xf32> to vector<8x16xf32>
    %311 = vector.broadcast %2 : f32 to vector<8x16xf32>
    %312 = arith.mulf %311, %310 : vector<8x16xf32>
    %313 = arith.addf %308, %312 : vector<8x16xf32>
    %314 = vector.extract_strided_slice %304 {offsets = [2, 0, 0], sizes = [1, 8, 16], strides = [1, 1, 1]} : vector<4x8x16xf32> to vector<1x8x16xf32>
    %315 = vector.shape_cast %314 : vector<1x8x16xf32> to vector<8x16xf32>
    %316 = vector.broadcast %3 : f32 to vector<8x16xf32>
    %317 = arith.mulf %316, %315 : vector<8x16xf32>
    %318 = arith.addf %313, %317 : vector<8x16xf32>
    %319 = vector.extract_strided_slice %304 {offsets = [3, 0, 0], sizes = [1, 8, 16], strides = [1, 1, 1]} : vector<4x8x16xf32> to vector<1x8x16xf32>
    %320 = vector.shape_cast %319 : vector<1x8x16xf32> to vector<8x16xf32>
    %321 = vector.broadcast %4 : f32 to vector<8x16xf32>
    %322 = arith.mulf %321, %320 : vector<8x16xf32>
    %323 = arith.addf %318, %322 : vector<8x16xf32>
    %cst_87 = arith.constant 2.500000e-01 : f32
    %324 = vector.broadcast %cst_87 : f32 to vector<8x16xf32>
    %325 = arith.mulf %324, %282 : vector<8x16xf32>
    %cst_88 = arith.constant 1.000000e+00 : f32
    %326 = vector.broadcast %cst_88 : f32 to vector<8x16xf32>
    %327 = arith.subf %326, %286 : vector<8x16xf32>
    %328 = arith.mulf %325, %327 : vector<8x16xf32>
    %329 = arith.addf %328, %323 : vector<8x16xf32>
    %cst_89 = arith.constant 5.000000e-01 : f32
    %330 = vector.broadcast %cst_89 : f32 to vector<8x16xf32>
    %331 = arith.cmpf ogt, %329, %330 : vector<8x16xf32>
    %332 = arith.extui %331 : vector<8x16xi1> to vector<8x16xi32>
    %333 = arith.sitofp %332 : vector<8x16xi32> to vector<8x16xf32>
    %cst_90 = arith.constant dense<0.000000e+00> : vector<16xf32>
    %334 = vector.multi_reduction <add>, %333, %cst_90 [0] : vector<8x16xf32> to vector<16xf32>
    %335 = vector.shape_cast %334 : vector<16xf32> to vector<1x16xf32>
    %cst_91 = arith.constant 1.250000e-01 : f32
    %336 = vector.broadcast %cst_91 : f32 to vector<1x16xf32>
    %337 = arith.mulf %335, %336 : vector<1x16xf32>
    %c0_92 = arith.constant 0 : index
    %c7 = arith.constant 7 : index
    %c0_93 = arith.constant 0 : index
    %c0_94 = arith.constant 0 : index
    %c0_95 = arith.constant 0 : index
    %338 = vector.load %arg3[%c0_92, %c7, %c0_93, %c0_94, %c0_95] : memref<1x8x4x8x16xf32, #tpu.memory_space<vmem>>, vector<1x1x4x8x16xf32>
    %339 = vector.shape_cast %338 : vector<1x1x4x8x16xf32> to vector<4x8x16xf32>
    %340 = vector.broadcast %0 : f32 to vector<4x8x16xf32>
    %341 = arith.mulf %339, %340 : vector<4x8x16xf32>
    %cst_96 = arith.constant 2.500000e-01 : f32
    %342 = vector.broadcast %cst_96 : f32 to vector<4x8x16xf32>
    %343 = arith.mulf %342, %300 : vector<4x8x16xf32>
    %cst_97 = arith.constant 1.000000e+00 : f32
    %344 = vector.broadcast %cst_97 : f32 to vector<4x8x16xf32>
    %345 = arith.subf %344, %304 : vector<4x8x16xf32>
    %346 = arith.mulf %343, %345 : vector<4x8x16xf32>
    %347 = arith.addf %346, %341 : vector<4x8x16xf32>
    %cst_98 = arith.constant 5.000000e-01 : f32
    %348 = vector.broadcast %cst_98 : f32 to vector<4x8x16xf32>
    %349 = arith.cmpf ogt, %347, %348 : vector<4x8x16xf32>
    %350 = arith.extui %349 : vector<4x8x16xi1> to vector<4x8x16xi32>
    %351 = arith.sitofp %350 : vector<4x8x16xi32> to vector<4x8x16xf32>
    %352 = vector.extract_strided_slice %351 {offsets = [0, 0, 0], sizes = [1, 8, 16], strides = [1, 1, 1]} : vector<4x8x16xf32> to vector<1x8x16xf32>
    %353 = vector.shape_cast %352 : vector<1x8x16xf32> to vector<8x16xf32>
    %354 = vector.broadcast %1 : f32 to vector<8x16xf32>
    %355 = arith.mulf %354, %353 : vector<8x16xf32>
    %356 = vector.extract_strided_slice %351 {offsets = [1, 0, 0], sizes = [1, 8, 16], strides = [1, 1, 1]} : vector<4x8x16xf32> to vector<1x8x16xf32>
    %357 = vector.shape_cast %356 : vector<1x8x16xf32> to vector<8x16xf32>
    %358 = vector.broadcast %2 : f32 to vector<8x16xf32>
    %359 = arith.mulf %358, %357 : vector<8x16xf32>
    %360 = arith.addf %355, %359 : vector<8x16xf32>
    %361 = vector.extract_strided_slice %351 {offsets = [2, 0, 0], sizes = [1, 8, 16], strides = [1, 1, 1]} : vector<4x8x16xf32> to vector<1x8x16xf32>
    %362 = vector.shape_cast %361 : vector<1x8x16xf32> to vector<8x16xf32>
    %363 = vector.broadcast %3 : f32 to vector<8x16xf32>
    %364 = arith.mulf %363, %362 : vector<8x16xf32>
    %365 = arith.addf %360, %364 : vector<8x16xf32>
    %366 = vector.extract_strided_slice %351 {offsets = [3, 0, 0], sizes = [1, 8, 16], strides = [1, 1, 1]} : vector<4x8x16xf32> to vector<1x8x16xf32>
    %367 = vector.shape_cast %366 : vector<1x8x16xf32> to vector<8x16xf32>
    %368 = vector.broadcast %4 : f32 to vector<8x16xf32>
    %369 = arith.mulf %368, %367 : vector<8x16xf32>
    %370 = arith.addf %365, %369 : vector<8x16xf32>
    %cst_99 = arith.constant 2.500000e-01 : f32
    %371 = vector.broadcast %cst_99 : f32 to vector<8x16xf32>
    %372 = arith.mulf %371, %329 : vector<8x16xf32>
    %cst_100 = arith.constant 1.000000e+00 : f32
    %373 = vector.broadcast %cst_100 : f32 to vector<8x16xf32>
    %374 = arith.subf %373, %333 : vector<8x16xf32>
    %375 = arith.mulf %372, %374 : vector<8x16xf32>
    %376 = arith.addf %375, %370 : vector<8x16xf32>
    %cst_101 = arith.constant 5.000000e-01 : f32
    %377 = vector.broadcast %cst_101 : f32 to vector<8x16xf32>
    %378 = arith.cmpf ogt, %376, %377 : vector<8x16xf32>
    %379 = arith.extui %378 : vector<8x16xi1> to vector<8x16xi32>
    %380 = arith.sitofp %379 : vector<8x16xi32> to vector<8x16xf32>
    %cst_102 = arith.constant dense<0.000000e+00> : vector<16xf32>
    %381 = vector.multi_reduction <add>, %380, %cst_102 [0] : vector<8x16xf32> to vector<16xf32>
    %382 = vector.shape_cast %381 : vector<16xf32> to vector<1x16xf32>
    %cst_103 = arith.constant 1.250000e-01 : f32
    %383 = vector.broadcast %cst_103 : f32 to vector<1x16xf32>
    %384 = arith.mulf %382, %383 : vector<1x16xf32>
    %385 = tpu.concatenate %55, %102, %149, %196, %243, %290, %337, %384 in 0 : vector<1x16xf32>, vector<1x16xf32>, vector<1x16xf32>, vector<1x16xf32>, vector<1x16xf32>, vector<1x16xf32>, vector<1x16xf32>, vector<1x16xf32> -> vector<8x16xf32>
    %c0_104 = arith.constant 0 : index
    %c0_105 = arith.constant 0 : index
    %c0_106 = arith.constant 0 : index
    %386 = vector.load %arg4[%c0_104, %c0_105, %c0_106] : memref<1x8x16xf32, #tpu.memory_space<vmem>>, vector<1x8x16xf32>
    %387 = vector.shape_cast %386 : vector<1x8x16xf32> to vector<8x16xf32>
    %388 = vector.shape_cast %385 : vector<8x16xf32> to vector<1x8x16xf32>
    tpu.vector_store %arg4[%c0_104, %c0_105, %c0_106], %388 {strides = array<i32>} : memref<1x8x16xf32, #tpu.memory_space<vmem>>, vector<1x8x16xf32>,
    return
  }
  func.func @transform_0(%arg0: i32) -> i32 {
    %c0_i32 = arith.constant 0 : i32
    %c0_i32_0 = arith.constant 0 : i32
    return %c0_i32 : i32
  }
  func.func @transform_1(%arg0: i32) -> i32 {
    %c0_i32 = arith.constant 0 : i32
    %c0_i32_0 = arith.constant 0 : i32
    return %c0_i32 : i32
  }
  func.func @transform_2(%arg0: i32) -> (i32, i32, i32, i32, i32) {
    %c0_i32 = arith.constant 0 : i32
    %c0_i32_0 = arith.constant 0 : i32
    %c0_i32_1 = arith.constant 0 : i32
    %c0_i32_2 = arith.constant 0 : i32
    %c0_i32_3 = arith.constant 0 : i32
    return %arg0, %c0_i32, %c0_i32_0, %c0_i32_1, %c0_i32_2 : i32, i32, i32, i32, i32
  }
  func.func @transform_3(%arg0: i32) -> (i32, i32, i32) {
    %c0_i32 = arith.constant 0 : i32
    %c0_i32_0 = arith.constant 0 : i32
    %c0_i32_1 = arith.constant 0 : i32
    return %arg0, %c0_i32, %c0_i32_0 : i32, i32, i32
  }
}

</mosaic_0001>

<llo_original>
// kernel: tpu_custom_call.1
$region0: #{tpu_custom_call.1}
  #allocation0 [shape = 'u32[]', space=smem, size = 0x4, offset = 0x4, fixed_abs, tag = 'smem constant byte address 0x4 - core index']
  #allocation1 [shape = 'u32[144,128]{1,0:T(1,128)}', space=vmem, size = 0x12000, scoped, tag = 'internal scratch']
  #allocation2 [shape = 'f32[1]{0:T(128)S(6)}', space=smem, size = 0x200, scoped, tag = 'scoped memory for tpu_custom_call.1']
  %s0 = inlined_call_operand.<no memory space> [shape: f32[1], index: 0, kind: input, shape index: {}]
  %s1 = inlined_call_operand.vmem [shape: f32[4], index: 1, kind: input, shape index: {}]
  %s2 = inlined_call_operand.hbm [shape: f32[1,8,4,8,16], index: 2, kind: input, shape index: {}]
  %s3 = inlined_call_operand.hbm [shape: f32[1,8,16], index: 3, kind: output, shape index: {}]
  %s4 = sld [smem:[#allocation0]]
  $region30: #{tpu_custom_call.1} parent=0
    _
  %s6 = ssub.s32 1, %s4
  %s7 = scalar_select 0, %s6, %s4
  %8 = sst [smem:[#allocation2]] %s0
  $region1: #{tpu_custom_call.1} parent=0
    #allocation3 [shape = 'u8[512]{0}', space=smem, size = 0x200, scoped, tag = 'input window, operand 1, single buffered']
    #allocation4 [shape = 's32[1]{0}', space=sflag, size = 0x4, scoped, tag = 'scoped memory for tpu_custom_call.1']
    #allocation5 [shape = 's32[1]{0}', space=sflag, size = 0x4, scoped, tag = 'scoped memory for tpu_custom_call.1']
    #allocation6 [shape = 's32[1]{0}', space=sflag, size = 0x4, scoped, tag = 'scoped memory for tpu_custom_call.1']
    #allocation7 [shape = 'u8[131072]{0}', space=vmem, size = 0x20000, scoped, tag = 'input window, operand 2, single buffered']
    #allocation8 [shape = 'u8[4096]{0}', space=vmem, size = 0x1000, scoped, tag = 'output window, operand 0, single buffered']
    %9 = vsyncpa [#allocation6], 0
    %10 = vsyncpa [#allocation4], 0
    %11 = vsyncpa [#allocation5], 0
    // Predicated region
    $region2: #{tpu_custom_call.1} parent=1 // pred_check
      _
    $region3: #{tpu_custom_call.1} parent=1 // pred_check_branch
      %13 = sbr.rel (0) target = $region5
    $region4: #{tpu_custom_call.1} parent=1 // pred_region
      _
    $region5: #{tpu_custom_call.1} parent=1 // pred_fallthru
      _
    // Predicated region
    $region6: #{tpu_custom_call.1} parent=1 // pred_check
      _
    $region7: #{tpu_custom_call.1} parent=1 // pred_check_branch
      %15 = sbr.rel (0) target = $region9
    $region8: #{tpu_custom_call.1} parent=1 // pred_region
      %s17 = ssub.s32 16, 16
      %18 = vsyncadd [#allocation6], %s17
      %s20 = sshll.u32 %s1, 4
      %s21 = int_to_ptr.vmem [resolvable:$true] %s20
      %23 = dma.vmem_to_smem %s21, 16, [#allocation3], [#allocation6]
    $region9: #{tpu_custom_call.1} parent=1 // pred_fallthru
      _
    // Predicated region
    $region10: #{tpu_custom_call.1} parent=1 // pred_check
      _
    $region11: #{tpu_custom_call.1} parent=1 // pred_check_branch
      %25 = sbr.rel (0) target = $region13
    $region12: #{tpu_custom_call.1} parent=1 // pred_region
      %s27 = ssub.s32 4096, 4096
      %28 = vsyncadd [#allocation4], %s27
      %s29 = sshll.u32 [#allocation7], 4
      %s30 = int_to_ptr.vmem [resolvable:$true] %s29
      %35 = dma.hbm_to_vmem [thread:$0]  %s2, 4096, %s30, [#allocation4], 128, 128, 8
    $region13: #{tpu_custom_call.1} parent=1 // pred_fallthru
      _
    // Predicated region
    $region14: #{tpu_custom_call.1} parent=1 // pred_check
      _
    $region15: #{tpu_custom_call.1} parent=1 // pred_check_branch
      %37 = sbr.rel (0) target = $region17
    $region16: #{tpu_custom_call.1} parent=1 // pred_region
      %38 = dma.done [#allocation6], 16
    $region17: #{tpu_custom_call.1} parent=1 // pred_fallthru
      _
    // Predicated region
    $region18: #{tpu_custom_call.1} parent=1 // pred_check
      _
    $region19: #{tpu_custom_call.1} parent=1 // pred_check_branch
      %40 = sbr.rel (0) target = $region21
    $region20: #{tpu_custom_call.1} parent=1 // pred_region
      %41 = dma.done [#allocation4], 4096
    $region21: #{tpu_custom_call.1} parent=1 // pred_fallthru
      _
    %42 = sfence
    %s43 = sld [smem:[#allocation2]]
    %s44 = sld [smem:[#allocation3]]
    %s45 = sld [smem:[#allocation3 + $0x1]]
    %s46 = sld [smem:[#allocation3 + $0x2]]
    %s47 = sld [smem:[#allocation3 + $0x3]]
    %v48 = vld [vmem:[#allocation7] sm:$0xff]
    %v49 = vld [vmem:[#allocation7 + $0x8] sm:$0xff]
    %v50 = vld [vmem:[#allocation7 + $0x10] sm:$0xff]
    %v51 = vld [vmem:[#allocation7 + $0x18] sm:$0xff]
    %v52 = vstv %s43
    %v53 = vmul.f32 %v48, %v52
    %v54 = vmul.f32 %v49, %v52
    %v55 = vmul.f32 %v50, %v52
    %v56 = vmul.f32 %v51, %v52
    %v57 = vadd.f32 %v53, 0.0
    %v58 = vadd.f32 %v54, 0.0
    %v59 = vadd.f32 %v55, 0.0
    %v60 = vadd.f32 %v56, 0.0
    %vm61 = vcmp.gt.f32.partialorder %v57, 0.5
    %vm62 = vcmp.gt.f32.partialorder %v58, 0.5
    %vm63 = vcmp.gt.f32.partialorder %v59, 0.5
    %vm64 = vcmp.gt.f32.partialorder %v60, 0.5
    %v65 = vsel %vm61, 1, 0
    %v66 = vsel %vm62, 1, 0
    %v67 = vsel %vm63, 1, 0
    %v68 = vsel %vm64, 1, 0
    %v69 = vcvt.s32.f32 %v65
    %v70 = vcvt.s32.f32 %v66
    %v71 = vcvt.s32.f32 %v67
    %v72 = vcvt.s32.f32 %v68
    %v73 = vstv %s44
    %v74 = vmul.f32 %v73, %v69
    %v75 = vstv %s45
    %v76 = vmul.f32 %v75, %v70
    %v77 = vadd.f32 %v74, %v76
    %v78 = vstv %s46
    %v79 = vmul.f32 %v78, %v71
    %v80 = vadd.f32 %v77, %v79
    %v81 = vstv %s47
    %v82 = vmul.f32 %v81, %v72
    %v83 = vadd.f32 %v80, %v82
    %v84 = vadd.f32 %v83, 0.0
    %vm85 = vcmp.gt.f32.partialorder %v84, 0.5
    %v86 = vsel %vm85, 1, 0
    %v87 = vcvt.s32.f32 %v86
    %vm88 = vcmask 130048
    %v89 = vsel %vm88, %v87, 0.0
    %v90 = vrot.slane %v89, 4
    %v91 = vadd.f32 %v89, %v90
    %v92 = vrot.slane %v91, 2
    %v93 = vadd.f32 %v91, %v92
    %v94 = vrot.slane %v93, 1
    %v95 = vadd.f32 %v93, %v94
    %v96 = vmul.f32 %v95, 0.125
    %s97 = scalar_lea.vmem [#allocation7], 32
    %v98 = vld [vmem:[%s97] sm:$0xff]
    %v99 = vld [vmem:[%s97 + $0x8] sm:$0xff]
    %v100 = vld [vmem:[%s97 + $0x10] sm:$0xff]
    %v101 = vld [vmem:[%s97 + $0x18] sm:$0xff]
    %v102 = vmul.f32 %v98, %v52
    %v103 = vmul.f32 %v99, %v52
    %v104 = vmul.f32 %v100, %v52
    %v105 = vmul.f32 %v101, %v52
    %v106 = vmul.f32 %v57, 0.25
    %v107 = vmul.f32 %v58, 0.25
    %v108 = vmul.f32 %v59, 0.25
    %v109 = vmul.f32 %v60, 0.25
    %v110 = vsub.f32 1.0, %v69
    %v111 = vsub.f32 1.0, %v70
    %v112 = vsub.f32 1.0, %v71
    %v113 = vsub.f32 1.0, %v72
    %v114 = vmul.f32 %v106, %v110
    %v115 = vmul.f32 %v107, %v111
    %v116 = vmul.f32 %v108, %v112
    %v117 = vmul.f32 %v109, %v113
    %v118 = vadd.f32 %v114, %v102
    %v119 = vadd.f32 %v115, %v103
    %v120 = vadd.f32 %v116, %v104
    %v121 = vadd.f32 %v117, %v105
    %vm122 = vcmp.gt.f32.partialorder %v118, 0.5
    %vm123 = vcmp.gt.f32.partialorder %v119, 0.5
    %vm124 = vcmp.gt.f32.partialorder %v120, 0.5
    %vm125 = vcmp.gt.f32.partialorder %v121, 0.5
    %v126 = vsel %vm122, 1, 0
    %v127 = vsel %vm123, 1, 0
    %v128 = vsel %vm124, 1, 0
    %v129 = vsel %vm125, 1, 0
    %v130 = vcvt.s32.f32 %v126
    %v131 = vcvt.s32.f32 %v127
    %v132 = vcvt.s32.f32 %v128
    %v133 = vcvt.s32.f32 %v129
    %v134 = vmul.f32 %v73, %v130
    %v135 = vmul.f32 %v75, %v131
    %v136 = vadd.f32 %v134, %v135
    %v137 = vmul.f32 %v78, %v132
    %v138 = vadd.f32 %v136, %v137
    %v139 = vmul.f32 %v81, %v133
    %v140 = vadd.f32 %v138, %v139
    %v141 = vmul.f32 %v84, 0.25
    %v142 = vsub.f32 1.0, %v87
    %v143 = vmul.f32 %v141, %v142
    %v144 = vadd.f32 %v143, %v140
    %vm145 = vcmp.gt.f32.partialorder %v144, 0.5
    %v146 = vsel %vm145, 1, 0
    %v147 = vcvt.s32.f32 %v146
    %v148 = vsel %vm88, %v147, 0.0
    %v149 = vrot.slane %v148, 4
    %v150 = vadd.f32 %v148, %v149
    %v151 = vrot.slane %v150, 2
    %v152 = vadd.f32 %v150, %v151
    %v153 = vrot.slane %v152, 1
    %v154 = vadd.f32 %v152, %v153
    %v155 = vmul.f32 %v154, 0.125
    %s156 = scalar_lea.vmem [#allocation7], 64
    %v157 = vld [vmem:[%s156] sm:$0xff]
    %v158 = vld [vmem:[%s156 + $0x8] sm:$0xff]
    %v159 = vld [vmem:[%s156 + $0x10] sm:$0xff]
    %v160 = vld [vmem:[%s156 + $0x18] sm:$0xff]
    %v161 = vmul.f32 %v157, %v52
    %v162 = vmul.f32 %v158, %v52
    %v163 = vmul.f32 %v159, %v52
    %v164 = vmul.f32 %v160, %v52
    %v165 = vmul.f32 %v118, 0.25
    %v166 = vmul.f32 %v119, 0.25
    %v167 = vmul.f32 %v120, 0.25
    %v168 = vmul.f32 %v121, 0.25
    %v169 = vsub.f32 1.0, %v130
    %v170 = vsub.f32 1.0, %v131
    %v171 = vsub.f32 1.0, %v132
    %v172 = vsub.f32 1.0, %v133
    %v173 = vmul.f32 %v165, %v169
    %v174 = vmul.f32 %v166, %v170
    %v175 = vmul.f32 %v167, %v171
    %v176 = vmul.f32 %v168, %v172
    %v177 = vadd.f32 %v173, %v161
    %v178 = vadd.f32 %v174, %v162
    %v179 = vadd.f32 %v175, %v163
    %v180 = vadd.f32 %v176, %v164
    %vm181 = vcmp.gt.f32.partialorder %v177, 0.5
    %vm182 = vcmp.gt.f32.partialorder %v178, 0.5
    %vm183 = vcmp.gt.f32.partialorder %v179, 0.5
    %vm184 = vcmp.gt.f32.partialorder %v180, 0.5
    %v185 = vsel %vm181, 1, 0
    %v186 = vsel %vm182, 1, 0
    %v187 = vsel %vm183, 1, 0
    %v188 = vsel %vm184, 1, 0
    %v189 = vcvt.s32.f32 %v185
    %v190 = vcvt.s32.f32 %v186
    %v191 = vcvt.s32.f32 %v187
    %v192 = vcvt.s32.f32 %v188
    %v193 = vmul.f32 %v73, %v189
    %v194 = vmul.f32 %v75, %v190
    %v195 = vadd.f32 %v193, %v194
    %v196 = vmul.f32 %v78, %v191
    %v197 = vadd.f32 %v195, %v196
    %v198 = vmul.f32 %v81, %v192
    %v199 = vadd.f32 %v197, %v198
    %v200 = vmul.f32 %v144, 0.25
    %v201 = vsub.f32 1.0, %v147
    %v202 = vmul.f32 %v200, %v201
    %v203 = vadd.f32 %v202, %v199
    %vm204 = vcmp.gt.f32.partialorder %v203, 0.5
    %v205 = vsel %vm204, 1, 0
    %v206 = vcvt.s32.f32 %v205
    %v207 = vsel %vm88, %v206, 0.0
    %v208 = vrot.slane %v207, 4
    %v209 = vadd.f32 %v207, %v208
    %v210 = vrot.slane %v209, 2
    %v211 = vadd.f32 %v209, %v210
    %v212 = vrot.slane %v211, 1
    %v213 = vadd.f32 %v211, %v212
    %v214 = vmul.f32 %v213, 0.125
    %s215 = scalar_lea.vmem [#allocation7], 96
    %v216 = vld [vmem:[%s215] sm:$0xff]
    %v217 = vld [vmem:[%s215 + $0x8] sm:$0xff]
    %v218 = vld [vmem:[%s215 + $0x10] sm:$0xff]
    %v219 = vld [vmem:[%s215 + $0x18] sm:$0xff]
    %v220 = vmul.f32 %v216, %v52
    %v221 = vmul.f32 %v217, %v52
    %v222 = vmul.f32 %v218, %v52
    %v223 = vmul.f32 %v219, %v52
    %v224 = vmul.f32 %v177, 0.25
    %v225 = vmul.f32 %v178, 0.25
    %v226 = vmul.f32 %v179, 0.25
    %v227 = vmul.f32 %v180, 0.25
    %v228 = vsub.f32 1.0, %v189
    %v229 = vsub.f32 1.0, %v190
    %v230 = vsub.f32 1.0, %v191
    %v231 = vsub.f32 1.0, %v192
    %v232 = vmul.f32 %v224, %v228
    %v233 = vmul.f32 %v225, %v229
    %v234 = vmul.f32 %v226, %v230
    %v235 = vmul.f32 %v227, %v231
    %v236 = vadd.f32 %v232, %v220
    %v237 = vadd.f32 %v233, %v221
    %v238 = vadd.f32 %v234, %v222
    %v239 = vadd.f32 %v235, %v223
    %vm240 = vcmp.gt.f32.partialorder %v236, 0.5
    %vm241 = vcmp.gt.f32.partialorder %v237, 0.5
    %vm242 = vcmp.gt.f32.partialorder %v238, 0.5
    %vm243 = vcmp.gt.f32.partialorder %v239, 0.5
    %v244 = vsel %vm240, 1, 0
    %v245 = vsel %vm241, 1, 0
    %v246 = vsel %vm242, 1, 0
    %v247 = vsel %vm243, 1, 0
    %v248 = vcvt.s32.f32 %v244
    %v249 = vcvt.s32.f32 %v245
    %v250 = vcvt.s32.f32 %v246
    %v251 = vcvt.s32.f32 %v247
    %v252 = vmul.f32 %v73, %v248
    %v253 = vmul.f32 %v75, %v249
    %v254 = vadd.f32 %v252, %v253
    %v255 = vmul.f32 %v78, %v250
    %v256 = vadd.f32 %v254, %v255
    %v257 = vmul.f32 %v81, %v251
    %v258 = vadd.f32 %v256, %v257
    %v259 = vmul.f32 %v203, 0.25
    %v260 = vsub.f32 1.0, %v206
    %v261 = vmul.f32 %v259, %v260
    %v262 = vadd.f32 %v261, %v258
    %vm263 = vcmp.gt.f32.partialorder %v262, 0.5
    %v264 = vsel %vm263, 1, 0
    %v265 = vcvt.s32.f32 %v264
    %v266 = vsel %vm88, %v265, 0.0
    %v267 = vrot.slane %v266, 4
    %v268 = vadd.f32 %v266, %v267
    %v269 = vrot.slane %v268, 2
    %v270 = vadd.f32 %v268, %v269
    %v271 = vrot.slane %v270, 1
    %v272 = vadd.f32 %v270, %v271
    %v273 = vmul.f32 %v272, 0.125
    %s274 = scalar_lea.vmem [#allocation7], 128
    %v275 = vld [vmem:[%s274] sm:$0xff]
    %v276 = vld [vmem:[%s274 + $0x8] sm:$0xff]
    %v277 = vld [vmem:[%s274 + $0x10] sm:$0xff]
    %v278 = vld [vmem:[%s274 + $0x18] sm:$0xff]
    %v279 = vmul.f32 %v275, %v52
    %v280 = vmul.f32 %v276, %v52
    %v281 = vmul.f32 %v277, %v52
    %v282 = vmul.f32 %v278, %v52
    %v283 = vmul.f32 %v236, 0.25
    %v284 = vmul.f32 %v237, 0.25
    %v285 = vmul.f32 %v238, 0.25
    %v286 = vmul.f32 %v239, 0.25
    %v287 = vsub.f32 1.0, %v248
    %v288 = vsub.f32 1.0, %v249
    %v289 = vsub.f32 1.0, %v250
    %v290 = vsub.f32 1.0, %v251
    %v291 = vmul.f32 %v283, %v287
    %v292 = vmul.f32 %v284, %v288
    %v293 = vmul.f32 %v285, %v289
    %v294 = vmul.f32 %v286, %v290
    %v295 = vadd.f32 %v291, %v279
    %v296 = vadd.f32 %v292, %v280
    %v297 = vadd.f32 %v293, %v281
    %v298 = vadd.f32 %v294, %v282
    %vm299 = vcmp.gt.f32.partialorder %v295, 0.5
    %vm300 = vcmp.gt.f32.partialorder %v296, 0.5
    %vm301 = vcmp.gt.f32.partialorder %v297, 0.5
    %vm302 = vcmp.gt.f32.partialorder %v298, 0.5
    %v303 = vsel %vm299, 1, 0
    %v304 = vsel %vm300, 1, 0
    %v305 = vsel %vm301, 1, 0
    %v306 = vsel %vm302, 1, 0
    %v307 = vcvt.s32.f32 %v303
    %v308 = vcvt.s32.f32 %v304
    %v309 = vcvt.s32.f32 %v305
    %v310 = vcvt.s32.f32 %v306
    %v311 = vmul.f32 %v73, %v307
    %v312 = vmul.f32 %v75, %v308
    %v313 = vadd.f32 %v311, %v312
    %v314 = vmul.f32 %v78, %v309
    %v315 = vadd.f32 %v313, %v314
    %v316 = vmul.f32 %v81, %v310
    %v317 = vadd.f32 %v315, %v316
    %v318 = vmul.f32 %v262, 0.25
    %v319 = vsub.f32 1.0, %v265
    %v320 = vmul.f32 %v318, %v319
    %v321 = vadd.f32 %v320, %v317
    %vm322 = vcmp.gt.f32.partialorder %v321, 0.5
    %v323 = vsel %vm322, 1, 0
    %v324 = vcvt.s32.f32 %v323
    %v325 = vsel %vm88, %v324, 0.0
    %v326 = vrot.slane %v325, 4
    %v327 = vadd.f32 %v325, %v326
    %v328 = vrot.slane %v327, 2
    %v329 = vadd.f32 %v327, %v328
    %v330 = vrot.slane %v329, 1
    %v331 = vadd.f32 %v329, %v330
    %v332 = vmul.f32 %v331, 0.125
    %s333 = scalar_lea.vmem [#allocation7], 160
    %v334 = vld [vmem:[%s333] sm:$0xff]
    %v335 = vld [vmem:[%s333 + $0x8] sm:$0xff]
    %v336 = vld [vmem:[%s333 + $0x10] sm:$0xff]
    %v337 = vld [vmem:[%s333 + $0x18] sm:$0xff]
    %v338 = vmul.f32 %v334, %v52
    %v339 = vmul.f32 %v335, %v52
    %v340 = vmul.f32 %v336, %v52
    %v341 = vmul.f32 %v337, %v52
    %v342 = vmul.f32 %v295, 0.25
    %v343 = vmul.f32 %v296, 0.25
    %v344 = vmul.f32 %v297, 0.25
    %v345 = vmul.f32 %v298, 0.25
    %v346 = vsub.f32 1.0, %v307
    %v347 = vsub.f32 1.0, %v308
    %v348 = vsub.f32 1.0, %v309
    %v349 = vsub.f32 1.0, %v310
    %v350 = vmul.f32 %v342, %v346
    %v351 = vmul.f32 %v343, %v347
    %v352 = vmul.f32 %v344, %v348
    %v353 = vmul.f32 %v345, %v349
    %v354 = vadd.f32 %v350, %v338
    %v355 = vadd.f32 %v351, %v339
    %v356 = vadd.f32 %v352, %v340
    %v357 = vadd.f32 %v353, %v341
    %vm358 = vcmp.gt.f32.partialorder %v354, 0.5
    %vm359 = vcmp.gt.f32.partialorder %v355, 0.5
    %vm360 = vcmp.gt.f32.partialorder %v356, 0.5
    %vm361 = vcmp.gt.f32.partialorder %v357, 0.5
    %v362 = vsel %vm358, 1, 0
    %v363 = vsel %vm359, 1, 0
    %v364 = vsel %vm360, 1, 0
    %v365 = vsel %vm361, 1, 0
    %v366 = vcvt.s32.f32 %v362
    %v367 = vcvt.s32.f32 %v363
    %v368 = vcvt.s32.f32 %v364
    %v369 = vcvt.s32.f32 %v365
    %v370 = vmul.f32 %v73, %v366
    %v371 = vmul.f32 %v75, %v367
    %v372 = vadd.f32 %v370, %v371
    %v373 = vmul.f32 %v78, %v368
    %v374 = vadd.f32 %v372, %v373
    %v375 = vmul.f32 %v81, %v369
    %v376 = vadd.f32 %v374, %v375
    %v377 = vmul.f32 %v321, 0.25
    %v378 = vsub.f32 1.0, %v324
    %v379 = vmul.f32 %v377, %v378
    %v380 = vadd.f32 %v379, %v376
    %vm381 = vcmp.gt.f32.partialorder %v380, 0.5
    %v382 = vsel %vm381, 1, 0
    %v383 = vcvt.s32.f32 %v382
    %v384 = vsel %vm88, %v383, 0.0
    %v385 = vrot.slane %v384, 4
    %v386 = vadd.f32 %v384, %v385
    %v387 = vrot.slane %v386, 2
    %v388 = vadd.f32 %v386, %v387
    %v389 = vrot.slane %v388, 1
    %v390 = vadd.f32 %v388, %v389
    %v391 = vmul.f32 %v390, 0.125
    %s392 = scalar_lea.vmem [#allocation7], 192
    %v393 = vld [vmem:[%s392] sm:$0xff]
    %v394 = vld [vmem:[%s392 + $0x8] sm:$0xff]
    %v395 = vld [vmem:[%s392 + $0x10] sm:$0xff]
    %v396 = vld [vmem:[%s392 + $0x18] sm:$0xff]
    %v397 = vmul.f32 %v393, %v52
    %v398 = vmul.f32 %v394, %v52
    %v399 = vmul.f32 %v395, %v52
    %v400 = vmul.f32 %v396, %v52
    %v401 = vmul.f32 %v354, 0.25
    %v402 = vmul.f32 %v355, 0.25
    %v403 = vmul.f32 %v356, 0.25
    %v404 = vmul.f32 %v357, 0.25
    %v405 = vsub.f32 1.0, %v366
    %v406 = vsub.f32 1.0, %v367
    %v407 = vsub.f32 1.0, %v368
    %v408 = vsub.f32 1.0, %v369
    %v409 = vmul.f32 %v401, %v405
    %v410 = vmul.f32 %v402, %v406
    %v411 = vmul.f32 %v403, %v407
    %v412 = vmul.f32 %v404, %v408
    %v413 = vadd.f32 %v409, %v397
    %v414 = vadd.f32 %v410, %v398
    %v415 = vadd.f32 %v411, %v399
    %v416 = vadd.f32 %v412, %v400
    %vm417 = vcmp.gt.f32.partialorder %v413, 0.5
    %vm418 = vcmp.gt.f32.partialorder %v414, 0.5
    %vm419 = vcmp.gt.f32.partialorder %v415, 0.5
    %vm420 = vcmp.gt.f32.partialorder %v416, 0.5
    %v421 = vsel %vm417, 1, 0
    %v422 = vsel %vm418, 1, 0
    %v423 = vsel %vm419, 1, 0
    %v424 = vsel %vm420, 1, 0
    %v425 = vcvt.s32.f32 %v421
    %v426 = vcvt.s32.f32 %v422
    %v427 = vcvt.s32.f32 %v423
    %v428 = vcvt.s32.f32 %v424
    %v429 = vmul.f32 %v73, %v425
    %v430 = vmul.f32 %v75, %v426
    %v431 = vadd.f32 %v429, %v430
    %v432 = vmul.f32 %v78, %v427
    %v433 = vadd.f32 %v431, %v432
    %v434 = vmul.f32 %v81, %v428
    %v435 = vadd.f32 %v433, %v434
    %v436 = vmul.f32 %v380, 0.25
    %v437 = vsub.f32 1.0, %v383
    %v438 = vmul.f32 %v436, %v437
    %v439 = vadd.f32 %v438, %v435
    %vm440 = vcmp.gt.f32.partialorder %v439, 0.5
    %v441 = vsel %vm440, 1, 0
    %v442 = vcvt.s32.f32 %v441
    %v443 = vsel %vm88, %v442, 0.0
    %v444 = vrot.slane %v443, 4
    %v445 = vadd.f32 %v443, %v444
    %v446 = vrot.slane %v445, 2
    %v447 = vadd.f32 %v445, %v446
    %v448 = vrot.slane %v447, 1
    %v449 = vadd.f32 %v447, %v448
    %v450 = vmul.f32 %v449, 0.125
    %s451 = scalar_lea.vmem [#allocation7], 224
    %v452 = vld [vmem:[%s451] sm:$0xff]
    %v453 = vld [vmem:[%s451 + $0x8] sm:$0xff]
    %v454 = vld [vmem:[%s451 + $0x10] sm:$0xff]
    %v455 = vld [vmem:[%s451 + $0x18] sm:$0xff]
    %v456 = vmul.f32 %v452, %v52
    %v457 = vmul.f32 %v453, %v52
    %v458 = vmul.f32 %v454, %v52
    %v459 = vmul.f32 %v455, %v52
    %v460 = vmul.f32 %v413, 0.25
    %v461 = vmul.f32 %v414, 0.25
    %v462 = vmul.f32 %v415, 0.25
    %v463 = vmul.f32 %v416, 0.25
    %v464 = vsub.f32 1.0, %v425
    %v465 = vsub.f32 1.0, %v426
    %v466 = vsub.f32 1.0, %v427
    %v467 = vsub.f32 1.0, %v428
    %v468 = vmul.f32 %v460, %v464
    %v469 = vmul.f32 %v461, %v465
    %v470 = vmul.f32 %v462, %v466
    %v471 = vmul.f32 %v463, %v467
    %v472 = vadd.f32 %v468, %v456
    %v473 = vadd.f32 %v469, %v457
    %v474 = vadd.f32 %v470, %v458
    %v475 = vadd.f32 %v471, %v459
    %vm476 = vcmp.gt.f32.partialorder %v472, 0.5
    %vm477 = vcmp.gt.f32.partialorder %v473, 0.5
    %vm478 = vcmp.gt.f32.partialorder %v474, 0.5
    %vm479 = vcmp.gt.f32.partialorder %v475, 0.5
    %v480 = vsel %vm476, 1, 0
    %v481 = vsel %vm477, 1, 0
    %v482 = vsel %vm478, 1, 0
    %v483 = vsel %vm479, 1, 0
    %v484 = vcvt.s32.f32 %v480
    %v485 = vcvt.s32.f32 %v481
    %v486 = vcvt.s32.f32 %v482
    %v487 = vcvt.s32.f32 %v483
    %v488 = vmul.f32 %v73, %v484
    %v489 = vmul.f32 %v75, %v485
    %v490 = vadd.f32 %v488, %v489
    %v491 = vmul.f32 %v78, %v486
    %v492 = vadd.f32 %v490, %v491
    %v493 = vmul.f32 %v81, %v487
    %v494 = vadd.f32 %v492, %v493
    %v495 = vmul.f32 %v439, 0.25
    %v496 = vsub.f32 1.0, %v442
    %v497 = vmul.f32 %v495, %v496
    %v498 = vadd.f32 %v497, %v494
    %vm499 = vcmp.gt.f32.partialorder %v498, 0.5
    %v500 = vsel %vm499, 1, 0
    %v501 = vcvt.s32.f32 %v500
    %v502 = vsel %vm88, %v501, 0.0
    %v503 = vrot.slane %v502, 4
    %v504 = vadd.f32 %v502, %v503
    %v505 = vrot.slane %v504, 2
    %v506 = vadd.f32 %v504, %v505
    %v507 = vrot.slane %v506, 1
    %v508 = vadd.f32 %v506, %v507
    %v509 = vmul.f32 %v508, 0.125
    %vm510 = vcmask 1040384
    %v511 = vsel %vm510, %v96, %v155
    %vm512 = vcmask 1041408
    %v513 = vsel %vm512, %v511, %v214
    %vm514 = vcmask 1042432
    %v515 = vsel %vm514, %v513, %v273
    %vm516 = vcmask 1043456
    %v517 = vsel %vm516, %v515, %v332
    %vm518 = vcmask 1044480
    %v519 = vsel %vm518, %v517, %v391
    %vm520 = vcmask 1045504
    %v521 = vsel %vm520, %v519, %v450
    %vm522 = vcmask 1046528
    %v523 = vsel %vm522, %v521, %v509
    %524 = vst.msk [vmem:[#allocation8] sm:$0xff] %vm88, %v523
    // Predicated region
    $region22: #{tpu_custom_call.1} parent=1 // pred_check
      _
    $region23: #{tpu_custom_call.1} parent=1 // pred_check_branch
      %526 = sbr.rel (0) target = $region25
    $region24: #{tpu_custom_call.1} parent=1 // pred_region
      %s528 = ssub.s32 128, 128
      %529 = vsyncadd [#allocation5], %s528
      %s531 = sshll.u32 [#allocation8], 4
      %s532 = int_to_ptr.vmem [resolvable:$true] %s531
      %534 = dma.vmem_to_hbm [thread:$0]  %s532, 128, %s3, [#allocation5]
    $region25: #{tpu_custom_call.1} parent=1 // pred_fallthru
      _
    // Predicated region
    $region26: #{tpu_custom_call.1} parent=1 // pred_check
      _
    $region27: #{tpu_custom_call.1} parent=1 // pred_check_branch
      %536 = sbr.rel (0) target = $region29
    $region28: #{tpu_custom_call.1} parent=1 // pred_region
      %537 = dma.done [#allocation5], 128
    $region29: #{tpu_custom_call.1} parent=1 // pred_fallthru
      _
    %538 = vsyncpa [#allocation4], 1
    %539 = vsyncpa [#allocation5], 1
    %540 = vsyncpa [#allocation6], 1

</llo_original>
